<compile_context>
chip_gen: v7x
topology: tpu7x:2x2x1
jax: 0.10.0
libtpu: 0.0.40
codegen_flags: <defaults>
</compile_context>

<pallas_src>
import math

import jax
import jax.numpy as jnp
from jax.experimental import pallas as pl
from jax.experimental.pallas import tpu as pltpu

# Set to jax.lax.Precision.HIGHEST for exact-f32 MXU parity at large n_factors
# (cheap: the kernel is HBM-bound).  None == default, sufficient at F=32.
MATMUL_PRECISION = None


# --------------------------------------------------------------------------
# Kernels
# --------------------------------------------------------------------------
def _neumf_core(act, mlp1_w, mlp1_b, wg, wm, b_scalar):
    """Shared compute on a stacked activation block act = [u; i], (2F, TB)."""
    F = wg.shape[0]
    u = act[:F]                       # (F, TB)   sublane-aligned slices (F % 8 == 0)
    it = act[F:]                      # (F, TB)
    # MLP branch first layer: the only remaining full matmul.
    h = jax.nn.sigmoid(
        jnp.dot(mlp1_w, act, preferred_element_type=jnp.float32,
                precision=MATMUL_PRECISION) + mlp1_b)            # (2F, TB)
    # gmf Linear, mlp2 Linear and the 2F->1 output Linear are folded into
    # per-row weights (exact at inference): VPU multiply + sublane reduce.
    logits = (jnp.sum(wg * (u * it), axis=0, keepdims=True)
              + jnp.sum(wm * h, axis=0, keepdims=True)
              + b_scalar)                                        # (1, TB)
    return jax.nn.sigmoid(logits)


def neumf_fused_gather_kernel(uidx_ref, iidx_ref, table_ref,
                              mlp1_w_ref, mlp1_b_ref,
                              wg_ref, wm_ref, b_ref, o_ref):
    n_rows = table_ref.shape[1]       # n_users + n_items
    tb = uidx_ref.shape[1]
    # In-kernel embedding gather as a one-hot MXU matmul against the combined
    # zero-padded table: one matmul yields the stacked [u; i] activation.
    rows = jax.lax.broadcasted_iota(jnp.int32, (n_rows, tb), 0)
    onehot = ((rows == uidx_ref[...]) | (rows == iidx_ref[...])).astype(jnp.float32)
    act = jnp.dot(table_ref[...], onehot, preferred_element_type=jnp.float32,
                  precision=MATMUL_PRECISION)                    # (2F, TB)
    o_ref[...] = _neumf_core(act, mlp1_w_ref[...], mlp1_b_ref[...],
                             wg_ref[...], wm_ref[...], b_ref[0, 0])


def neumf_act_kernel(act_ref, mlp1_w_ref, mlp1_b_ref,
                     wg_ref, wm_ref, b_ref, o_ref):
    o_ref[...] = _neumf_core(act_ref[...], mlp1_w_ref[...], mlp1_b_ref[...],
                             wg_ref[...], wm_ref[...], b_ref[0, 0])


# --------------------------------------------------------------------------
# Parameters
# --------------------------------------------------------------------------
def init_params(key, n_users, n_items, n_factors):
    """PyTorch-layout params (N(0,1) embeddings, U(-k,k) linear)."""
    ks = jax.random.split(key, 10)

    def linear(kw, kb, fin, fout):
        bound = 1.0 / math.sqrt(fin)
        w = jax.random.uniform(kw, (fout, fin), minval=-bound, maxval=bound,
                               dtype=jnp.float32)
        b = jax.random.uniform(kb, (fout,), minval=-bound, maxval=bound,
                               dtype=jnp.float32)
        return w, b

    params = {}
    params["user_emb"] = jax.random.normal(ks[0], (n_users, n_factors), jnp.float32)
    params["item_emb"] = jax.random.normal(ks[1], (n_items, n_factors), jnp.float32)
    params["gmf"] = linear(ks[2], ks[3], n_factors, n_factors)
    params["mlp1"] = linear(ks[4], ks[5], 2 * n_factors, 2 * n_factors)
    params["mlp2"] = linear(ks[6], ks[7], 2 * n_factors, n_factors)
    params["out"] = linear(ks[8], ks[9], 2 * n_factors, 1)
    return params


def prepare_kernel_params(params):
    """One-time layout prep + algebraic folding (all exact at inference)."""
    n_users, F = params["user_emb"].shape
    n_items = params["item_emb"].shape[0]
    gmf_w, gmf_b = params["gmf"]
    mlp1_w, mlp1_b = params["mlp1"]
    mlp2_w, mlp2_b = params["mlp2"]
    out_w, out_b = params["out"]

    # Combined, zero-padded transposed table: table @ onehot -> [u; i] stacked.
    table = jnp.zeros((2 * F, n_users + n_items), jnp.float32)
    table = table.at[:F, :n_users].set(params["user_emb"].T)
    table = table.at[F:, n_users:].set(params["item_emb"].T)

    # Fold gmf Linear and mlp2 Linear into the 2F->1 output head.
    wg_fused = out_w[0, :F] @ gmf_w                          # (F,)
    wm_fused = out_w[0, F:] @ mlp2_w                         # (2F,)
    b_fused = out_w[0, :F] @ gmf_b + out_w[0, F:] @ mlp2_b + out_b[0]

    return {
        "F": F, "n_users": n_users, "n_items": n_items,
        "user_emb_t": jnp.asarray(params["user_emb"].T),     # (F, n_users)
        "item_emb_t": jnp.asarray(params["item_emb"].T),     # (F, n_items)
        "table": table,                                      # (2F, n_users+n_items)
        "mlp1_w": mlp1_w,                                    # (2F, 2F)
        "mlp1_b": mlp1_b.reshape(2 * F, 1),
        "wg": wg_fused.reshape(F, 1),
        "wm": wm_fused.reshape(2 * F, 1),
        "b_fused": jnp.asarray(b_fused, jnp.float32).reshape(1, 1),
    }


# --------------------------------------------------------------------------
# Wrapper
# --------------------------------------------------------------------------
def _round_up(x, m):
    return ((x + m - 1) // m) * m


def _batch_tiling(B, block_b):
    block_b = max(128, _round_up(block_b, 128))        # guard: keep lanes dense
    tb = min(block_b, _round_up(max(B, 1), 128))
    # Keep >= 2 grid steps when the batch allows it so ("parallel",) can shard
    # the batch across v7x's two TensorCores.
    if tb > 128 and _round_up(max(B, 1), tb) == tb:
        tb = _round_up(tb // 2, 128)
    b_pad = _round_up(max(B, 1), tb)
    return tb, b_pad


def neumf_forward(kparams, user_idx, item_idx, *, block_b=4096, fuse_gather=None):
    F = kparams["F"]
    n_users = kparams["n_users"]
    n_items = kparams["n_items"]
    B = user_idx.shape[0]

    tb, b_pad = _batch_tiling(B, block_b)
    grid = (b_pad // tb,)

    uidx = jnp.pad(user_idx.astype(jnp.int32), (0, b_pad - B))   # pad -> valid idx 0
    iidx = jnp.pad(item_idx.astype(jnp.int32), (0, b_pad - B))

    table_bytes = 4 * kparams["table"].size
    if fuse_gather is None:
        fuse_gather = table_bytes <= 8 * 1024 * 1024             # tables fit in VMEM

    def const(shape):
        return pl.BlockSpec(shape, lambda b: (0, 0))             # VMEM-resident weights

    lane_spec = pl.BlockSpec((1, tb), lambda b: (0, b))
    smem_spec = pl.BlockSpec(memory_space=pltpu.MemorySpace.SMEM)

    common_weights = (kparams["mlp1_w"], kparams["mlp1_b"],
                      kparams["wg"], kparams["wm"], kparams["b_fused"])
    common_specs = [const((2 * F, 2 * F)), const((2 * F, 1)),
                    const((F, 1)), const((2 * F, 1)), smem_spec]
    weight_bytes = 4 * (kparams["mlp1_w"].size + kparams["mlp1_b"].size
                        + kparams["wg"].size + kparams["wm"].size)

    if fuse_gather:
        n_rows = n_users + n_items
        kernel = neumf_fused_gather_kernel
        inputs = (uidx.reshape(1, b_pad),
                  (iidx + n_users).reshape(1, b_pad),             # shift into table cols
                  kparams["table"]) + common_weights
        in_specs = [lane_spec, lane_spec, const((2 * F, n_rows))] + common_specs
        weight_bytes += table_bytes
        per_tile_io = 4 * tb * 3                                  # int32 idx x2 + f32 out
        live = 4 * tb * (2 * (2 * F) + n_rows + 4)                # act, h, onehot, temps
    else:
        # Fallback for tables too large for VMEM: XLA gather in the wrapper,
        # stacked activation presented as a single (2F, B_pad) slab.
        u_t = jnp.take(kparams["user_emb_t"], uidx, axis=1)       # (F, b_pad)
        i_t = jnp.take(kparams["item_emb_t"], iidx, axis=1)       # (F, b_pad)
        act = jnp.concatenate([u_t, i_t], axis=0)                 # (2F, b_pad)
        kernel = neumf_act_kernel
        inputs = (act,) + common_weights
        in_specs = [pl.BlockSpec((2 * F, tb), lambda b: (0, b))] + common_specs
        per_tile_io = 4 * tb * (2 * F + 1)
        live = 4 * tb * (2 * (2 * F) + 4)

    vmem_est = 2 * weight_bytes + 2 * 2 * per_tile_io + 2 * live
    vmem_limit = int(min(max(2 * vmem_est, 32 * 1024 * 1024), 64 * 1024 * 1024))

    out = pl.pallas_call(
        kernel,
        out_shape=jax.ShapeDtypeStruct((1, b_pad), jnp.float32),
        grid=grid,
        in_specs=in_specs,
        out_specs=pl.BlockSpec((1, tb), lambda b: (0, b)),
        compiler_params=pltpu.CompilerParams(
            dimension_semantics=("parallel",),
            vmem_limit_bytes=vmem_limit,
        ),
    )(*inputs)

    # Lane-dense (1, B_pad) slab -> (B,), matching torch .squeeze() of (B, 1).
    return out[0, :B]


# --------------------------------------------------------------------------
# Pure-JAX reference (matches the PyTorch forward in eval mode)
# --------------------------------------------------------------------------
def neumf_reference(params, user_idx, item_idx):
    u = params["user_emb"][user_idx]
    it = params["item_emb"][item_idx]
    gmf_w, gmf_b = params["gmf"]
    mlp1_w, mlp1_b = params["mlp1"]
    mlp2_w, mlp2_b = params["mlp2"]
    out_w, out_b = params["out"]
    gmf = (u * it) @ gmf_w.T + gmf_b
    mlp = jnp.concatenate([u, it], axis=1)
    mlp = jax.nn.sigmoid(mlp @ mlp1_w.T + mlp1_b)
    mlp = mlp @ mlp2_w.T + mlp2_b
    neumf = jnp.concatenate([gmf, mlp], axis=1)
    return jax.nn.sigmoid((neumf @ out_w.T + out_b)[:, 0])


if __name__ == "__main__":
    n_users, n_items, n_factors = 32, 64, 32
    batch = 8

    key = jax.random.PRNGKey(0)
    pkey, ukey, ikey = jax.random.split(key, 3)
    params = init_params(pkey, n_users, n_items, n_factors)
    kparams = prepare_kernel_params(params)

    user_idx = jax.random.randint(ukey, (batch,), 0, n_users, dtype=jnp.int32)
    item_idx = jax.random.randint(ikey, (batch,), 0, n_items, dtype=jnp.int32)

    ref = neumf_reference(params, user_idx, item_idx)

    # Primary path: fused in-kernel gather (tables are VMEM-resident here).
    out = jax.block_until_ready(neumf_forward(kparams, user_idx, item_idx))
    assert out.shape == (batch,)
    assert jnp.allclose(out, ref, atol=1e-5, rtol=1e-5), (out, ref)

    # Fallback path (XLA gather + pre-stacked activation) stays correct too.
    out_fb = jax.block_until_ready(
        neumf_forward(kparams, user_idx, item_idx, fuse_gather=False))
    assert jnp.allclose(out_fb, ref, atol=1e-5, rtol=1e-5), (out_fb, ref)

    print("KERNEL_OK")
</pallas_src>

<mosaic_0001>
module attributes {stable_mosaic.version = 11 : i64} {
  func.func @neumf_fused_gather_kernel(%arg0: i32, %arg1: memref<1x128xi32, #tpu.memory_space<vmem>>, %arg2: memref<1x128xi32, #tpu.memory_space<vmem>>, %arg3: memref<64x96xf32, #tpu.memory_space<vmem>>, %arg4: memref<64x64xf32, #tpu.memory_space<vmem>>, %arg5: memref<64x1xf32, #tpu.memory_space<vmem>>, %arg6: memref<32x1xf32, #tpu.memory_space<vmem>>, %arg7: memref<64x1xf32, #tpu.memory_space<vmem>>, %arg8: memref<1x1xf32, #tpu.memory_space<smem>>, %arg9: memref<1x128xf32, #tpu.memory_space<vmem>>) attributes {dimension_semantics = [#tpu.dimension_semantics<parallel>], iteration_bounds = array<i64: 1>, scalar_prefetch = 0 : i64, scratch_operands = 0 : i64, tpu.core_type = #tpu.core_type<tc>, window_params = [{transform_indices = @transform_0, window_bounds = array<i64: 1, 128>}, {transform_indices = @transform_1, window_bounds = array<i64: 1, 128>}, {pipeline_mode = #tpu.pipeline_mode<synchronous>, transform_indices = @transform_2, window_bounds = array<i64: 64, 96>}, {pipeline_mode = #tpu.pipeline_mode<synchronous>, transform_indices = @transform_3, window_bounds = array<i64: 64, 64>}, {pipeline_mode = #tpu.pipeline_mode<synchronous>, transform_indices = @transform_4, window_bounds = array<i64: 64, 1>}, {pipeline_mode = #tpu.pipeline_mode<synchronous>, transform_indices = @transform_5, window_bounds = array<i64: 32, 1>}, {pipeline_mode = #tpu.pipeline_mode<synchronous>, transform_indices = @transform_6, window_bounds = array<i64: 64, 1>}, {transform_indices = @transform_7, window_bounds = array<i64: 1, 1>}, {transform_indices = @transform_8, window_bounds = array<i64: 1, 128>}]} {
    %0 = tpu.iota {dimensions = array<i32: 0>} : vector<96x128xi32>
    %c0 = arith.constant 0 : index
    %c0_0 = arith.constant 0 : index
    %1 = vector.load %arg1[%c0, %c0_0] : memref<1x128xi32, #tpu.memory_space<vmem>>, vector<1x128xi32>
    %2 = vector.broadcast %1 : vector<1x128xi32> to vector<96x128xi32>
    %3 = arith.cmpi eq, %0, %2 : vector<96x128xi32>
    %c0_1 = arith.constant 0 : index
    %c0_2 = arith.constant 0 : index
    %4 = vector.load %arg2[%c0_1, %c0_2] : memref<1x128xi32, #tpu.memory_space<vmem>>, vector<1x128xi32>
    %5 = vector.broadcast %4 : vector<1x128xi32> to vector<96x128xi32>
    %6 = arith.cmpi eq, %0, %5 : vector<96x128xi32>
    %7 = arith.ori %3, %6 : vector<96x128xi1>
    %8 = arith.extui %7 : vector<96x128xi1> to vector<96x128xi32>
    %9 = arith.sitofp %8 : vector<96x128xi32> to vector<96x128xf32>
    %c0_3 = arith.constant 0 : index
    %c0_4 = arith.constant 0 : index
    %10 = vector.load %arg3[%c0_3, %c0_4] : memref<64x96xf32, #tpu.memory_space<vmem>>, vector<64x96xf32>
    %cst = arith.constant dense<0.000000e+00> : vector<64x128xf32>
    %11 = tpu.matmul %10, %9, %cst {dimension_numbers = #tpu.dot_dimension_numbers<[1], [0], [0], [1], [0, 0, 1, 1], [], []>} : vector<64x96xf32>, vector<96x128xf32>, vector<64x128xf32> -> vector<64x128xf32>
    %c0_5 = arith.constant 0 : index
    %c0_6 = arith.constant 0 : index
    %12 = vector.load %arg4[%c0_5, %c0_6] : memref<64x64xf32, #tpu.memory_space<vmem>>, vector<64x64xf32>
    %c0_7 = arith.constant 0 : index
    %c0_8 = arith.constant 0 : index
    %13 = vector.load %arg5[%c0_7, %c0_8] : memref<64x1xf32, #tpu.memory_space<vmem>>, vector<64x1xf32>
    %c0_9 = arith.constant 0 : index
    %c0_10 = arith.constant 0 : index
    %14 = vector.load %arg6[%c0_9, %c0_10] : memref<32x1xf32, #tpu.memory_space<vmem>>, vector<32x1xf32>
    %c0_11 = arith.constant 0 : index
    %c0_12 = arith.constant 0 : index
    %15 = vector.load %arg7[%c0_11, %c0_12] : memref<64x1xf32, #tpu.memory_space<vmem>>, vector<64x1xf32>
    %c0_13 = arith.constant 0 : index
    %c0_14 = arith.constant 0 : index
    %16 = memref.load %arg8[%c0_13, %c0_14] : memref<1x1xf32, #tpu.memory_space<smem>>
    %17 = vector.extract_strided_slice %11 {offsets = [0, 0], sizes = [32, 128], strides = [1, 1]} : vector<64x128xf32> to vector<32x128xf32>
    %18 = vector.extract_strided_slice %11 {offsets = [32, 0], sizes = [32, 128], strides = [1, 1]} : vector<64x128xf32> to vector<32x128xf32>
    %cst_15 = arith.constant dense<0.000000e+00> : vector<64x128xf32>
    %19 = tpu.matmul %12, %11, %cst_15 {dimension_numbers = #tpu.dot_dimension_numbers<[1], [0], [0], [1], [0, 0, 1, 1], [], []>} : vector<64x64xf32>, vector<64x128xf32>, vector<64x128xf32> -> vector<64x128xf32>
    %20 = vector.broadcast %13 : vector<64x1xf32> to vector<64x128xf32>
    %21 = arith.addf %19, %20 : vector<64x128xf32>
    %22 = arith.negf %21 : vector<64x128xf32>
    %23 = math.exp %22 : vector<64x128xf32>
    %cst_16 = arith.constant 1.000000e+00 : f32
    %24 = vector.broadcast %cst_16 : f32 to vector<64x128xf32>
    %25 = arith.addf %24, %23 : vector<64x128xf32>
    %26 = arith.divf %24, %25 : vector<64x128xf32>
    %27 = arith.mulf %17, %18 : vector<32x128xf32>
    %28 = vector.broadcast %14 : vector<32x1xf32> to vector<32x128xf32>
    %29 = arith.mulf %28, %27 : vector<32x128xf32>
    %cst_17 = arith.constant dense<0.000000e+00> : vector<128xf32>
    %30 = vector.multi_reduction <add>, %29, %cst_17 [0] : vector<32x128xf32> to vector<128xf32>
    %31 = vector.shape_cast %30 : vector<128xf32> to vector<1x128xf32>
    %32 = vector.broadcast %15 : vector<64x1xf32> to vector<64x128xf32>
    %33 = arith.mulf %32, %26 : vector<64x128xf32>
    %cst_18 = arith.constant dense<0.000000e+00> : vector<128xf32>
    %34 = vector.multi_reduction <add>, %33, %cst_18 [0] : vector<64x128xf32> to vector<128xf32>
    %35 = vector.shape_cast %34 : vector<128xf32> to vector<1x128xf32>
    %36 = arith.addf %31, %35 : vector<1x128xf32>
    %37 = vector.broadcast %16 : f32 to vector<1x128xf32>
    %38 = arith.addf %36, %37 : vector<1x128xf32>
    %39 = arith.negf %38 : vector<1x128xf32>
    %40 = math.exp %39 : vector<1x128xf32>
    %cst_19 = arith.constant 1.000000e+00 : f32
    %41 = vector.broadcast %cst_19 : f32 to vector<1x128xf32>
    %42 = arith.addf %41, %40 : vector<1x128xf32>
    %43 = arith.divf %41, %42 : vector<1x128xf32>
    %c0_20 = arith.constant 0 : index
    %c0_21 = arith.constant 0 : index
    %44 = vector.load %arg9[%c0_20, %c0_21] : memref<1x128xf32, #tpu.memory_space<vmem>>, vector<1x128xf32>
    tpu.vector_store %arg9[%c0_20, %c0_21], %43 {strides = array<i32>} : memref<1x128xf32, #tpu.memory_space<vmem>>, vector<1x128xf32>,
    return
  }
  func.func @transform_0(%arg0: i32) -> (i32, i32) {
    %c0_i32 = arith.constant 0 : i32
    %c0_i32_0 = arith.constant 0 : i32
    return %c0_i32, %arg0 : i32, i32
  }
  func.func @transform_1(%arg0: i32) -> (i32, i32) {
    %c0_i32 = arith.constant 0 : i32
    %c0_i32_0 = arith.constant 0 : i32
    return %c0_i32, %arg0 : i32, i32
  }
  func.func @transform_2(%arg0: i32) -> (i32, i32) {
    %c0_i32 = arith.constant 0 : i32
    %c0_i32_0 = arith.constant 0 : i32
    %c0_i32_1 = arith.constant 0 : i32
    return %c0_i32, %c0_i32_0 : i32, i32
  }
  func.func @transform_3(%arg0: i32) -> (i32, i32) {
    %c0_i32 = arith.constant 0 : i32
    %c0_i32_0 = arith.constant 0 : i32
    %c0_i32_1 = arith.constant 0 : i32
    return %c0_i32, %c0_i32_0 : i32, i32
  }
  func.func @transform_4(%arg0: i32) -> (i32, i32) {
    %c0_i32 = arith.constant 0 : i32
    %c0_i32_0 = arith.constant 0 : i32
    %c0_i32_1 = arith.constant 0 : i32
    return %c0_i32, %c0_i32_0 : i32, i32
  }
  func.func @transform_5(%arg0: i32) -> (i32, i32) {
    %c0_i32 = arith.constant 0 : i32
    %c0_i32_0 = arith.constant 0 : i32
    %c0_i32_1 = arith.constant 0 : i32
    return %c0_i32, %c0_i32_0 : i32, i32
  }
  func.func @transform_6(%arg0: i32) -> (i32, i32) {
    %c0_i32 = arith.constant 0 : i32
    %c0_i32_0 = arith.constant 0 : i32
    %c0_i32_1 = arith.constant 0 : i32
    return %c0_i32, %c0_i32_0 : i32, i32
  }
  func.func @transform_7(%arg0: i32) -> (i32, i32) {
    %c0_i32 = arith.constant 0 : i32
    %c0_i32_0 = arith.constant 0 : i32
    %c0_i32_1 = arith.constant 0 : i32
    return %c0_i32, %c0_i32_0 : i32, i32
  }
  func.func @transform_8(%arg0: i32) -> (i32, i32) {
    %c0_i32 = arith.constant 0 : i32
    %c0_i32_0 = arith.constant 0 : i32
    return %c0_i32, %arg0 : i32, i32
  }
}

</mosaic_0001>

<llo_original>
// kernel: tpu_custom_call.1
$region0: #{tpu_custom_call.1}
  #allocation0 [shape = 'u32[]', space=smem, size = 0x4, offset = 0x4, fixed_abs, tag = 'smem constant byte address 0x4 - core index']
  #allocation1 [shape = 'u32[144,128]{1,0:T(1,128)}', space=vmem, size = 0x12000, scoped, tag = 'internal scratch']
  #allocation2 [shape = 'f32[1,1]{1,0:T(1,128)S(6)}', space=smem, size = 0x200, scoped, tag = 'scoped memory for tpu_custom_call.1']
  %s0 = inlined_call_operand.vmem [shape: s32[1,128], index: 0, kind: input, shape index: {}]
  %s1 = inlined_call_operand.vmem [shape: s32[1,128], index: 1, kind: input, shape index: {}]
  %s2 = inlined_call_operand.vmem [shape: f32[64,96], index: 2, kind: input, shape index: {}]
  %s3 = inlined_call_operand.vmem [shape: f32[64,64], index: 3, kind: input, shape index: {}]
  %s4 = inlined_call_operand.vmem [shape: f32[64,1], index: 4, kind: input, shape index: {}]
  %s5 = inlined_call_operand.vmem [shape: f32[32,1], index: 5, kind: input, shape index: {}]
  %s6 = inlined_call_operand.vmem [shape: f32[64,1], index: 6, kind: input, shape index: {}]
  %s7 = inlined_call_operand.<no memory space> [shape: f32[1,1], index: 7, kind: input, shape index: {}]
  %s8 = inlined_call_operand.hbm [shape: f32[1,128], index: 8, kind: output, shape index: {}]
  %s9 = sld [smem:[#allocation0]]
  $region42: #{tpu_custom_call.1} parent=0
    _
  %s11 = ssub.s32 1, %s9
  %s12 = scalar_select 0, %s11, %s9
  %13 = sst [smem:[#allocation2]] %s7
  $region1: #{tpu_custom_call.1} parent=0
    #allocation3 [shape = 'u8[512]{0}', space=vmem, size = 0x400, scoped, tag = 'output window, operand 0, single buffered']
    #allocation4 [shape = 's32[1]{0}', space=sflag, size = 0x4, scoped, tag = 'scoped memory for tpu_custom_call.1']
    %14 = vsyncpa [#allocation4], 0
    // Predicated region
    $region2: #{tpu_custom_call.1} parent=1 // pred_check
      _
    $region3: #{tpu_custom_call.1} parent=1 // pred_check_branch
      %16 = sbr.rel (0) target = $region5
    $region4: #{tpu_custom_call.1} parent=1 // pred_region
      _
    $region5: #{tpu_custom_call.1} parent=1 // pred_fallthru
      _
    // Predicated region
    $region6: #{tpu_custom_call.1} parent=1 // pred_check
      _
    $region7: #{tpu_custom_call.1} parent=1 // pred_check_branch
      %18 = sbr.rel (0) target = $region9
    $region8: #{tpu_custom_call.1} parent=1 // pred_region
      _
    $region9: #{tpu_custom_call.1} parent=1 // pred_fallthru
      _
    // Predicated region
    $region10: #{tpu_custom_call.1} parent=1 // pred_check
      _
    $region11: #{tpu_custom_call.1} parent=1 // pred_check_branch
      %20 = sbr.rel (0) target = $region13
    $region12: #{tpu_custom_call.1} parent=1 // pred_region
      _
    $region13: #{tpu_custom_call.1} parent=1 // pred_fallthru
      _
    // Predicated region
    $region14: #{tpu_custom_call.1} parent=1 // pred_check
      _
    $region15: #{tpu_custom_call.1} parent=1 // pred_check_branch
      %22 = sbr.rel (0) target = $region17
    $region16: #{tpu_custom_call.1} parent=1 // pred_region
      _
    $region17: #{tpu_custom_call.1} parent=1 // pred_fallthru
      _
    // Predicated region
    $region18: #{tpu_custom_call.1} parent=1 // pred_check
      _
    $region19: #{tpu_custom_call.1} parent=1 // pred_check_branch
      %24 = sbr.rel (0) target = $region21
    $region20: #{tpu_custom_call.1} parent=1 // pred_region
      _
    $region21: #{tpu_custom_call.1} parent=1 // pred_fallthru
      _
    // Predicated region
    $region22: #{tpu_custom_call.1} parent=1 // pred_check
      _
    $region23: #{tpu_custom_call.1} parent=1 // pred_check_branch
      %26 = sbr.rel (0) target = $region25
    $region24: #{tpu_custom_call.1} parent=1 // pred_region
      _
    $region25: #{tpu_custom_call.1} parent=1 // pred_fallthru
      _
    // Predicated region
    $region26: #{tpu_custom_call.1} parent=1 // pred_check
      _
    $region27: #{tpu_custom_call.1} parent=1 // pred_check_branch
      %28 = sbr.rel (0) target = $region29
    $region28: #{tpu_custom_call.1} parent=1 // pred_region
      _
    $region29: #{tpu_custom_call.1} parent=1 // pred_fallthru
      _
    // Predicated region
    $region30: #{tpu_custom_call.1} parent=1 // pred_check
      _
    $region31: #{tpu_custom_call.1} parent=1 // pred_check_branch
      %30 = sbr.rel (0) target = $region33
    $region32: #{tpu_custom_call.1} parent=1 // pred_region
      _
    $region33: #{tpu_custom_call.1} parent=1 // pred_fallthru
      _
    %v31 = vlaneseq
    %v32 = vshrl.u32 %v31, 7
    %v33 = vadd.s32 %v32, 8
    %v34 = vadd.s32 %v32, 16
    %v35 = vadd.s32 %v32, 24
    %v36 = vadd.s32 %v32, 32
    %v37 = vadd.s32 %v32, 40
    %v38 = vadd.s32 %v32, 48
    %v39 = vadd.s32 %v32, 56
    %v40 = vadd.s32 %v32, 64
    %v41 = vadd.s32 %v32, 72
    %v42 = vadd.s32 %v32, 80
    %v43 = vadd.s32 %v32, 88
    %v44 = vld [vmem:[%s0] sm:$0x1]
    %v45 = vlaneseq
    %v46 = vshrl.u32 %v45, 7
    %v47 = vsub.s32 0, %v46
    %v48 = vrot.slane %v44, %v47
    %vm49 = vcmp.eq.s32.totalorder %v32, %v48
    %vm50 = vcmp.eq.s32.totalorder %v33, %v48
    %vm51 = vcmp.eq.s32.totalorder %v34, %v48
    %vm52 = vcmp.eq.s32.totalorder %v35, %v48
    %vm53 = vcmp.eq.s32.totalorder %v36, %v48
    %vm54 = vcmp.eq.s32.totalorder %v37, %v48
    %vm55 = vcmp.eq.s32.totalorder %v38, %v48
    %vm56 = vcmp.eq.s32.totalorder %v39, %v48
    %vm57 = vcmp.eq.s32.totalorder %v40, %v48
    %vm58 = vcmp.eq.s32.totalorder %v41, %v48
    %vm59 = vcmp.eq.s32.totalorder %v42, %v48
    %vm60 = vcmp.eq.s32.totalorder %v43, %v48
    %v61 = vld [vmem:[%s1] sm:$0x1]
    %v62 = vlaneseq
    %v63 = vshrl.u32 %v62, 7
    %v64 = vsub.s32 0, %v63
    %v65 = vrot.slane %v61, %v64
    %vm66 = vcmp.eq.s32.totalorder %v32, %v65
    %vm67 = vcmp.eq.s32.totalorder %v33, %v65
    %vm68 = vcmp.eq.s32.totalorder %v34, %v65
    %vm69 = vcmp.eq.s32.totalorder %v35, %v65
    %vm70 = vcmp.eq.s32.totalorder %v36, %v65
    %vm71 = vcmp.eq.s32.totalorder %v37, %v65
    %vm72 = vcmp.eq.s32.totalorder %v38, %v65
    %vm73 = vcmp.eq.s32.totalorder %v39, %v65
    %vm74 = vcmp.eq.s32.totalorder %v40, %v65
    %vm75 = vcmp.eq.s32.totalorder %v41, %v65
    %vm76 = vcmp.eq.s32.totalorder %v42, %v65
    %vm77 = vcmp.eq.s32.totalorder %v43, %v65
    %vm78 = vmor %vm49, %vm66
    %vm79 = vmor %vm50, %vm67
    %vm80 = vmor %vm51, %vm68
    %vm81 = vmor %vm52, %vm69
    %vm82 = vmor %vm53, %vm70
    %vm83 = vmor %vm54, %vm71
    %vm84 = vmor %vm55, %vm72
    %vm85 = vmor %vm56, %vm73
    %vm86 = vmor %vm57, %vm74
    %vm87 = vmor %vm58, %vm75
    %vm88 = vmor %vm59, %vm76
    %vm89 = vmor %vm60, %vm77
    %v90 = vsel %vm78, 1, 0
    %v91 = vsel %vm79, 1, 0
    %v92 = vsel %vm80, 1, 0
    %v93 = vsel %vm81, 1, 0
    %v94 = vsel %vm82, 1, 0
    %v95 = vsel %vm83, 1, 0
    %v96 = vsel %vm84, 1, 0
    %v97 = vsel %vm85, 1, 0
    %v98 = vsel %vm86, 1, 0
    %v99 = vsel %vm87, 1, 0
    %v100 = vsel %vm88, 1, 0
    %v101 = vsel %vm89, 1, 0
    %v102 = vcvt.s32.f32 %v90
    %v103 = vcvt.s32.f32 %v91
    %v104 = vcvt.s32.f32 %v92
    %v105 = vcvt.s32.f32 %v93
    %v106 = vcvt.s32.f32 %v94
    %v107 = vcvt.s32.f32 %v95
    %v108 = vcvt.s32.f32 %v96
    %v109 = vcvt.s32.f32 %v97
    %v110 = vcvt.s32.f32 %v98
    %v111 = vcvt.s32.f32 %v99
    %v112 = vcvt.s32.f32 %v100
    %v113 = vcvt.s32.f32 %v101
    %v114 = vld [vmem:[%s2] sm:$0xff]
    %v115 = vld [vmem:[%s2 + $0x8] sm:$0xff]
    %v116 = vld [vmem:[%s2 + $0x10] sm:$0xff]
    %v117 = vld [vmem:[%s2 + $0x18] sm:$0xff]
    %v118 = vld [vmem:[%s2 + $0x20] sm:$0xff]
    %v119 = vld [vmem:[%s2 + $0x28] sm:$0xff]
    %v120 = vld [vmem:[%s2 + $0x30] sm:$0xff]
    %v121 = vld [vmem:[%s2 + $0x38] sm:$0xff]
    %vm122 = vcmask 785408
    %v124 = vsel %vm122, %v114, 0
    %v127 = vsel %vm122, %v115, 0
    %v130 = vsel %vm122, %v116, 0
    %v133 = vsel %vm122, %v117, 0
    %v136 = vsel %vm122, %v118, 0
    %v139 = vsel %vm122, %v119, 0
    %v142 = vsel %vm122, %v120, 0
    %v145 = vsel %vm122, %v121, 0
    %147 = vmatprep.subr.mxu0 0.0
    %148 = vmatpush1.msra.mxu0 %v102
    %149 = vmatprep.subr.mxu0 0.0
    %150 = vmatpush1.msra.mxu0 %v103
    %151 = vmatprep.subr.mxu0 0.0
    %152 = vmatpush1.msra.mxu0 %v104
    %153 = vmatprep.subr.mxu0 0.0
    %154 = vmatpush1.msra.mxu0 %v105
    %155 = vmatprep.subr.mxu0 0.0
    %156 = vmatpush1.msra.mxu0 %v106
    %157 = vmatprep.subr.mxu0 0.0
    %158 = vmatpush1.msra.mxu0 %v107
    %159 = vmatprep.subr.mxu0 0.0
    %160 = vmatpush1.msra.mxu0 %v108
    %161 = vmatprep.subr.mxu0 0.0
    %162 = vmatpush1.msra.mxu0 %v109
    %163 = vmatprep.subr.mxu0 0.0
    %164 = vmatpush1.msra.mxu0 %v110
    %165 = vmatprep.subr.mxu0 0.0
    %166 = vmatpush1.msra.mxu0 %v111
    %167 = vmatprep.subr.mxu0 0.0
    %168 = vmatpush1.msra.mxu0 %v112
    %169 = vmatprep.subr.mxu0 0.0
    %170 = vmatpush1.msra.mxu0 %v113
    %171 = vmatprep.subr.mxu0 0.0
    %172 = vmatpush1.msra.mxu0 0.0
    %173 = vmatprep.subr.mxu0 0.0
    %174 = vmatpush1.msra.mxu0 0.0
    %175 = vmatprep.subr.mxu0 0.0
    %176 = vmatpush1.msra.mxu0 0.0
    %177 = vmatprep.subr.mxu0 0.0
    %178 = vmatpush1.msra.mxu0 0.0
    %179 = vmatprep.subr.mxu0 0.0
    %180 = vmatpush1.msra.mxu0 0.0
    %181 = vmatprep.subr.mxu0 0.0
    %182 = vmatpush1.msra.mxu0 0.0
    %183 = vmatprep.subr.mxu0 0.0
    %184 = vmatpush1.msra.mxu0 0.0
    %185 = vmatprep.subr.mxu0 0.0
    %186 = vmatpush1.msra.mxu0 0.0
    %187 = vmatprep.subr.mxu0 0.0
    %188 = vmatpush1.msra.mxu0 0.0
    %189 = vmatprep.subr.mxu0 0.0
    %190 = vmatpush1.msra.mxu0 0.0
    %191 = vmatprep.subr.mxu0 0.0
    %192 = vmatpush1.msra.mxu0 0.0
    %193 = vmatprep.subr.mxu0 0.0
    %194 = vmatpush1.msra.mxu0 0.0
    %195 = vmatprep.subr.mxu0 0.0
    %196 = vmatpush1.msra.mxu0 0.0
    %197 = vmatprep.subr.mxu0 0.0
    %198 = vmatpush1.msra.mxu0 0.0
    %199 = vmatprep.subr.mxu0 0.0
    %200 = vmatpush1.msra.mxu0 0.0
    %201 = vmatprep.subr.mxu0 0.0
    %202 = vmatpush1.msra.mxu0 0.0
    %203 = vmatprep.subr.mxu0 0.0
    %204 = vmatpush1.msra.mxu0 0.0
    %205 = vmatprep.subr.mxu0 0.0
    %206 = vmatpush1.msra.mxu0 0.0
    %207 = vmatprep.subr.mxu0 0.0
    %208 = vmatpush1.msra.mxu0 0.0
    %209 = vmatprep.subr.mxu0 0.0
    %210 = vmatpush1.msra.mxu0 0.0
    %211 = vmatprep.mubr.f32.mxu0 0.0
    %212 = vmatmul.mubr.f32.gmra.mrb[0].mxu0 %v124
    %v213 = vpop.f32.mrb[0].mxu0
    %v214 = vadd.f32 0.0, %v213
    %v215 = vpop.f32.mrb[0].mxu0
    %216 = vmatprep.mubr.f32.mxu0 0.0
    %217 = vmatmul.mubr.f32.gmra.mrb[0].mxu0 %v127
    %v218 = vpop.f32.mrb[0].mxu0
    %v219 = vadd.f32 0.0, %v218
    %v220 = vpop.f32.mrb[0].mxu0
    %221 = vmatprep.mubr.f32.mxu0 0.0
    %222 = vmatmul.mubr.f32.gmra.mrb[0].mxu0 %v130
    %v223 = vpop.f32.mrb[0].mxu0
    %v224 = vadd.f32 0.0, %v223
    %v225 = vpop.f32.mrb[0].mxu0
    %226 = vmatprep.mubr.f32.mxu0 0.0
    %227 = vmatmul.mubr.f32.gmra.mrb[0].mxu0 %v133
    %v228 = vpop.f32.mrb[0].mxu0
    %v229 = vadd.f32 0.0, %v228
    %v230 = vpop.f32.mrb[0].mxu0
    %231 = vmatprep.mubr.f32.mxu0 0.0
    %232 = vmatmul.mubr.f32.gmra.mrb[0].mxu0 %v136
    %v233 = vpop.f32.mrb[0].mxu0
    %v234 = vadd.f32 0.0, %v233
    %v235 = vpop.f32.mrb[0].mxu0
    %236 = vmatprep.mubr.f32.mxu0 0.0
    %237 = vmatmul.mubr.f32.gmra.mrb[0].mxu0 %v139
    %v238 = vpop.f32.mrb[0].mxu0
    %v239 = vadd.f32 0.0, %v238
    %v240 = vpop.f32.mrb[0].mxu0
    %241 = vmatprep.mubr.f32.mxu0 0.0
    %242 = vmatmul.mubr.f32.gmra.mrb[0].mxu0 %v142
    %v243 = vpop.f32.mrb[0].mxu0
    %v244 = vadd.f32 0.0, %v243
    %v245 = vpop.f32.mrb[0].mxu0
    %246 = vmatprep.mubr.f32.mxu0 0.0
    %247 = vmatmul.mubr.f32.gmra.mrb[0].mxu0 %v145
    %v248 = vpop.f32.mrb[0].mxu0
    %v249 = vadd.f32 0.0, %v248
    %v250 = vpop.f32.mrb[0].mxu0
    %251 = vdwg.mxu0
    %v252 = vld [vmem:[%s3] sm:$0xff]
    %v253 = vld [vmem:[%s3 + $0x8] sm:$0xff]
    %v254 = vld [vmem:[%s3 + $0x10] sm:$0xff]
    %v255 = vld [vmem:[%s3 + $0x18] sm:$0xff]
    %v256 = vld [vmem:[%s3 + $0x20] sm:$0xff]
    %v257 = vld [vmem:[%s3 + $0x28] sm:$0xff]
    %v258 = vld [vmem:[%s3 + $0x30] sm:$0xff]
    %v259 = vld [vmem:[%s3 + $0x38] sm:$0xff]
    %v260 = vld [vmem:[%s4] sm:$0xff]
    %v261 = vld [vmem:[%s4 + $0x8] sm:$0xff]
    %v262 = vld [vmem:[%s4 + $0x10] sm:$0xff]
    %v263 = vld [vmem:[%s4 + $0x18] sm:$0xff]
    %v264 = vld [vmem:[%s4 + $0x20] sm:$0xff]
    %v265 = vld [vmem:[%s4 + $0x28] sm:$0xff]
    %v266 = vld [vmem:[%s4 + $0x30] sm:$0xff]
    %v267 = vld [vmem:[%s4 + $0x38] sm:$0xff]
    %v268 = vld [vmem:[%s5] sm:$0xff]
    %v269 = vld [vmem:[%s5 + $0x8] sm:$0xff]
    %v270 = vld [vmem:[%s5 + $0x10] sm:$0xff]
    %v271 = vld [vmem:[%s5 + $0x18] sm:$0xff]
    %v272 = vld [vmem:[%s6] sm:$0xff]
    %v273 = vld [vmem:[%s6 + $0x8] sm:$0xff]
    %v274 = vld [vmem:[%s6 + $0x10] sm:$0xff]
    %v275 = vld [vmem:[%s6 + $0x18] sm:$0xff]
    %v276 = vld [vmem:[%s6 + $0x20] sm:$0xff]
    %v277 = vld [vmem:[%s6 + $0x28] sm:$0xff]
    %v278 = vld [vmem:[%s6 + $0x30] sm:$0xff]
    %v279 = vld [vmem:[%s6 + $0x38] sm:$0xff]
    %s280 = sld [smem:[#allocation2]]
    %282 = vset.pattern.permute.xlu0 0
    %283 = vperm.xlu0 %282, %v260
    %v284 = vpop.permute.xlu0 %283
    %287 = vset.pattern.permute.xlu0 0
    %288 = vperm.xlu0 %287, %v261
    %v289 = vpop.permute.xlu0 %288
    %292 = vset.pattern.permute.xlu0 0
    %293 = vperm.xlu0 %292, %v262
    %v294 = vpop.permute.xlu0 %293
    %297 = vset.pattern.permute.xlu0 0
    %298 = vperm.xlu0 %297, %v263
    %v299 = vpop.permute.xlu0 %298
    %302 = vset.pattern.permute.xlu0 0
    %303 = vperm.xlu0 %302, %v264
    %v304 = vpop.permute.xlu0 %303
    %307 = vset.pattern.permute.xlu0 0
    %308 = vperm.xlu0 %307, %v265
    %v309 = vpop.permute.xlu0 %308
    %312 = vset.pattern.permute.xlu0 0
    %313 = vperm.xlu0 %312, %v266
    %v314 = vpop.permute.xlu0 %313
    %317 = vset.pattern.permute.xlu0 0
    %318 = vperm.xlu0 %317, %v267
    %v319 = vpop.permute.xlu0 %318
    %vm321 = vcmask 523264
    %v323 = vsel %vm321, %v252, 0
    %v326 = vsel %vm321, %v253, 0
    %v329 = vsel %vm321, %v254, 0
    %v332 = vsel %vm321, %v255, 0
    %v335 = vsel %vm321, %v256, 0
    %v338 = vsel %vm321, %v257, 0
    %v341 = vsel %vm321, %v258, 0
    %v344 = vsel %vm321, %v259, 0
    %346 = vmatprep.subr.mxu0 0.0
    %347 = vmatpush1.msra.mxu0 %v214
    %348 = vmatprep.subr.mxu0 0.0
    %349 = vmatpush1.msra.mxu0 %v219
    %350 = vmatprep.subr.mxu0 0.0
    %351 = vmatpush1.msra.mxu0 %v224
    %352 = vmatprep.subr.mxu0 0.0
    %353 = vmatpush1.msra.mxu0 %v229
    %354 = vmatprep.subr.mxu0 0.0
    %355 = vmatpush1.msra.mxu0 %v234
    %356 = vmatprep.subr.mxu0 0.0
    %357 = vmatpush1.msra.mxu0 %v239
    %358 = vmatprep.subr.mxu0 0.0
    %359 = vmatpush1.msra.mxu0 %v244
    %360 = vmatprep.subr.mxu0 0.0
    %361 = vmatpush1.msra.mxu0 %v249
    %362 = vmatprep.subr.mxu0 0.0
    %363 = vmatpush1.msra.mxu0 0.0
    %364 = vmatprep.subr.mxu0 0.0
    %365 = vmatpush1.msra.mxu0 0.0
    %366 = vmatprep.subr.mxu0 0.0
    %367 = vmatpush1.msra.mxu0 0.0
    %368 = vmatprep.subr.mxu0 0.0
    %369 = vmatpush1.msra.mxu0 0.0
    %370 = vmatprep.subr.mxu0 0.0
    %371 = vmatpush1.msra.mxu0 0.0
    %372 = vmatprep.subr.mxu0 0.0
    %373 = vmatpush1.msra.mxu0 0.0
    %374 = vmatprep.subr.mxu0 0.0
    %375 = vmatpush1.msra.mxu0 0.0
    %376 = vmatprep.subr.mxu0 0.0
    %377 = vmatpush1.msra.mxu0 0.0
    %378 = vmatprep.subr.mxu0 0.0
    %379 = vmatpush1.msra.mxu0 0.0
    %380 = vmatprep.subr.mxu0 0.0
    %381 = vmatpush1.msra.mxu0 0.0
    %382 = vmatprep.subr.mxu0 0.0
    %383 = vmatpush1.msra.mxu0 0.0
    %384 = vmatprep.subr.mxu0 0.0
    %385 = vmatpush1.msra.mxu0 0.0
    %386 = vmatprep.subr.mxu0 0.0
    %387 = vmatpush1.msra.mxu0 0.0
    %388 = vmatprep.subr.mxu0 0.0
    %389 = vmatpush1.msra.mxu0 0.0
    %390 = vmatprep.subr.mxu0 0.0
    %391 = vmatpush1.msra.mxu0 0.0
    %392 = vmatprep.subr.mxu0 0.0
    %393 = vmatpush1.msra.mxu0 0.0
    %394 = vmatprep.subr.mxu0 0.0
    %395 = vmatpush1.msra.mxu0 0.0
    %396 = vmatprep.subr.mxu0 0.0
    %397 = vmatpush1.msra.mxu0 0.0
    %398 = vmatprep.subr.mxu0 0.0
    %399 = vmatpush1.msra.mxu0 0.0
    %400 = vmatprep.subr.mxu0 0.0
    %401 = vmatpush1.msra.mxu0 0.0
    %402 = vmatprep.subr.mxu0 0.0
    %403 = vmatpush1.msra.mxu0 0.0
    %404 = vmatprep.subr.mxu0 0.0
    %405 = vmatpush1.msra.mxu0 0.0
    %406 = vmatprep.subr.mxu0 0.0
    %407 = vmatpush1.msra.mxu0 0.0
    %408 = vmatprep.subr.mxu0 0.0
    %409 = vmatpush1.msra.mxu0 0.0
    %410 = vmatprep.mubr.f32.mxu0 0.0
    %411 = vmatmul.mubr.f32.gmra.mrb[0].mxu0 %v323
    %v412 = vpop.f32.mrb[0].mxu0
    %v413 = vadd.f32 %v284, %v412
    %v414 = vpop.f32.mrb[0].mxu0
    %415 = vmatprep.mubr.f32.mxu0 0.0
    %416 = vmatmul.mubr.f32.gmra.mrb[0].mxu0 %v326
    %v417 = vpop.f32.mrb[0].mxu0
    %v418 = vadd.f32 %v289, %v417
    %v419 = vpop.f32.mrb[0].mxu0
    %420 = vmatprep.mubr.f32.mxu0 0.0
    %421 = vmatmul.mubr.f32.gmra.mrb[0].mxu0 %v329
    %v422 = vpop.f32.mrb[0].mxu0
    %v423 = vadd.f32 %v294, %v422
    %v424 = vpop.f32.mrb[0].mxu0
    %425 = vmatprep.mubr.f32.mxu0 0.0
    %426 = vmatmul.mubr.f32.gmra.mrb[0].mxu0 %v332
    %v427 = vpop.f32.mrb[0].mxu0
    %v428 = vadd.f32 %v299, %v427
    %v429 = vpop.f32.mrb[0].mxu0
    %430 = vmatprep.mubr.f32.mxu0 0.0
    %431 = vmatmul.mubr.f32.gmra.mrb[0].mxu0 %v335
    %v432 = vpop.f32.mrb[0].mxu0
    %v433 = vadd.f32 %v304, %v432
    %v434 = vpop.f32.mrb[0].mxu0
    %435 = vmatprep.mubr.f32.mxu0 0.0
    %436 = vmatmul.mubr.f32.gmra.mrb[0].mxu0 %v338
    %v437 = vpop.f32.mrb[0].mxu0
    %v438 = vadd.f32 %v309, %v437
    %v439 = vpop.f32.mrb[0].mxu0
    %440 = vmatprep.mubr.f32.mxu0 0.0
    %441 = vmatmul.mubr.f32.gmra.mrb[0].mxu0 %v341
    %v442 = vpop.f32.mrb[0].mxu0
    %v443 = vadd.f32 %v314, %v442
    %v444 = vpop.f32.mrb[0].mxu0
    %445 = vmatprep.mubr.f32.mxu0 0.0
    %446 = vmatmul.mubr.f32.gmra.mrb[0].mxu0 %v344
    %v447 = vpop.f32.mrb[0].mxu0
    %v448 = vadd.f32 %v319, %v447
    %v449 = vpop.f32.mrb[0].mxu0
    %450 = vdwg.mxu0
    %v451 = vxor.u32 %v413, 2147483648
    %v452 = vxor.u32 %v418, 2147483648
    %v453 = vxor.u32 %v423, 2147483648
    %v454 = vxor.u32 %v428, 2147483648
    %v455 = vxor.u32 %v433, 2147483648
    %v456 = vxor.u32 %v438, 2147483648
    %v457 = vxor.u32 %v443, 2147483648
    %v458 = vxor.u32 %v448, 2147483648
    %v459 = vmul.f32 %v451, 1.442695
    %v460 = vpow.pop %v459
    %v461 = vmul.f32 %v452, 1.442695
    %v462 = vpow.pop %v461
    %v463 = vmul.f32 %v453, 1.442695
    %v464 = vpow.pop %v463
    %v465 = vmul.f32 %v454, 1.442695
    %v466 = vpow.pop %v465
    %v467 = vmul.f32 %v455, 1.442695
    %v468 = vpow.pop %v467
    %v469 = vmul.f32 %v456, 1.442695
    %v470 = vpow.pop %v469
    %v471 = vmul.f32 %v457, 1.442695
    %v472 = vpow.pop %v471
    %v473 = vmul.f32 %v458, 1.442695
    %v474 = vpow.pop %v473
    %v475 = vadd.f32 %v460, 1.0
    %v476 = vadd.f32 %v462, 1.0
    %v477 = vadd.f32 %v464, 1.0
    %v478 = vadd.f32 %v466, 1.0
    %v479 = vadd.f32 %v468, 1.0
    %v480 = vadd.f32 %v470, 1.0
    %v481 = vadd.f32 %v472, 1.0
    %v482 = vadd.f32 %v474, 1.0
    %v483 = vrcp.pop %v475
    %v484 = vmul.f32 1.0, %v483
    %v485 = vrcp.pop %v476
    %v486 = vmul.f32 1.0, %v485
    %v487 = vrcp.pop %v477
    %v488 = vmul.f32 1.0, %v487
    %v489 = vrcp.pop %v478
    %v490 = vmul.f32 1.0, %v489
    %v491 = vrcp.pop %v479
    %v492 = vmul.f32 1.0, %v491
    %v493 = vrcp.pop %v480
    %v494 = vmul.f32 1.0, %v493
    %v495 = vrcp.pop %v481
    %v496 = vmul.f32 1.0, %v495
    %v497 = vrcp.pop %v482
    %v498 = vmul.f32 1.0, %v497
    %v499 = vmul.f32 %v214, %v234
    %v500 = vmul.f32 %v219, %v239
    %v501 = vmul.f32 %v224, %v244
    %v502 = vmul.f32 %v229, %v249
    %504 = vset.pattern.permute.xlu0 0
    %505 = vperm.xlu0 %504, %v268
    %v506 = vpop.permute.xlu0 %505
    %509 = vset.pattern.permute.xlu0 0
    %510 = vperm.xlu0 %509, %v269
    %v511 = vpop.permute.xlu0 %510
    %514 = vset.pattern.permute.xlu0 0
    %515 = vperm.xlu0 %514, %v270
    %v516 = vpop.permute.xlu0 %515
    %519 = vset.pattern.permute.xlu0 0
    %520 = vperm.xlu0 %519, %v271
    %v521 = vpop.permute.xlu0 %520
    %v523 = vmul.f32 %v506, %v499
    %v524 = vmul.f32 %v511, %v500
    %v525 = vmul.f32 %v516, %v501
    %v526 = vmul.f32 %v521, %v502
    %v527 = vadd.f32 %v523, %v524
    %v528 = vadd.f32 %v527, %v525
    %v529 = vadd.f32 %v528, %v526
    %v530 = vrot.slane %v529, 4
    %v531 = vadd.f32 %v529, %v530
    %v532 = vrot.slane %v531, 2
    %v533 = vadd.f32 %v531, %v532
    %v534 = vrot.slane %v533, 1
    %v535 = vadd.f32 %v533, %v534
    %537 = vset.pattern.permute.xlu0 0
    %538 = vperm.xlu0 %537, %v272
    %v539 = vpop.permute.xlu0 %538
    %542 = vset.pattern.permute.xlu0 0
    %543 = vperm.xlu0 %542, %v273
    %v544 = vpop.permute.xlu0 %543
    %547 = vset.pattern.permute.xlu0 0
    %548 = vperm.xlu0 %547, %v274
    %v549 = vpop.permute.xlu0 %548
    %552 = vset.pattern.permute.xlu0 0
    %553 = vperm.xlu0 %552, %v275
    %v554 = vpop.permute.xlu0 %553
    %557 = vset.pattern.permute.xlu0 0
    %558 = vperm.xlu0 %557, %v276
    %v559 = vpop.permute.xlu0 %558
    %562 = vset.pattern.permute.xlu0 0
    %563 = vperm.xlu0 %562, %v277
    %v564 = vpop.permute.xlu0 %563
    %567 = vset.pattern.permute.xlu0 0
    %568 = vperm.xlu0 %567, %v278
    %v569 = vpop.permute.xlu0 %568
    %572 = vset.pattern.permute.xlu0 0
    %573 = vperm.xlu0 %572, %v279
    %v574 = vpop.permute.xlu0 %573
    %v576 = vmul.f32 %v539, %v484
    %v577 = vmul.f32 %v544, %v486
    %v578 = vmul.f32 %v549, %v488
    %v579 = vmul.f32 %v554, %v490
    %v580 = vmul.f32 %v559, %v492
    %v581 = vmul.f32 %v564, %v494
    %v582 = vmul.f32 %v569, %v496
    %v583 = vmul.f32 %v574, %v498
    %v584 = vadd.f32 %v576, %v577
    %v585 = vadd.f32 %v584, %v578
    %v586 = vadd.f32 %v585, %v579
    %v587 = vadd.f32 %v586, %v580
    %v588 = vadd.f32 %v587, %v581
    %v589 = vadd.f32 %v588, %v582
    %v590 = vadd.f32 %v589, %v583
    %v591 = vrot.slane %v590, 4
    %v592 = vadd.f32 %v590, %v591
    %v593 = vrot.slane %v592, 2
    %v594 = vadd.f32 %v592, %v593
    %v595 = vrot.slane %v594, 1
    %v596 = vadd.f32 %v594, %v595
    %v597 = vadd.f32 %v535, %v596
    %v598 = vstv %s280
    %v599 = vadd.f32 %v597, %v598
    %v600 = vxor.u32 %v599, 2147483648
    %v601 = vmul.f32 %v600, 1.442695
    %v602 = vpow.pop %v601
    %v603 = vadd.f32 %v602, 1.0
    %v604 = vrcp.pop %v603
    %v605 = vmul.f32 1.0, %v604
    %606 = vst [vmem:[#allocation3] sm:$0x1] %v605
    // Predicated region
    $region34: #{tpu_custom_call.1} parent=1 // pred_check
      _
    $region35: #{tpu_custom_call.1} parent=1 // pred_check_branch
      %608 = sbr.rel (0) target = $region37
    $region36: #{tpu_custom_call.1} parent=1 // pred_region
      %s610 = ssub.s32 16, 16
      %611 = vsyncadd [#allocation4], %s610
      %s613 = sshll.u32 [#allocation3], 4
      %s614 = int_to_ptr.vmem [resolvable:$true] %s613
      %616 = dma.vmem_to_hbm [thread:$0]  %s614, 16, %s8, [#allocation4]
    $region37: #{tpu_custom_call.1} parent=1 // pred_fallthru
      _
    // Predicated region
    $region38: #{tpu_custom_call.1} parent=1 // pred_check
      _
    $region39: #{tpu_custom_call.1} parent=1 // pred_check_branch
      %618 = sbr.rel (0) target = $region41
    $region40: #{tpu_custom_call.1} parent=1 // pred_region
      %619 = dma.done [#allocation4], 16
    $region41: #{tpu_custom_call.1} parent=1 // pred_fallthru
      _
    %620 = vsyncpa [#allocation4], 1

</llo_original>
